<compile_context>
chip_gen: v5e
topology: v5e:2x2
jax: 0.10.0
libtpu: 0.0.40
codegen_flags: <defaults>
</compile_context>

<pallas_src>
import functools

import jax
import jax.numpy as jnp
from jax.experimental import pallas as pl
from jax.experimental.pallas import tpu as pltpu


def _round_up(x, m):
    return ((x + m - 1) // m) * m


def _inproj_kernel(h_ref, w_in_ref, b_in_ref, x_ref, ss_ref):
    """X = H @ W_in + b_in (f32 accumulation) + per-row sum-of-squares.

    MXU inputs (h, w_in) arrive already in the compute dtype (bf16 by default,
    cast once in the wrapper); bias add and the reduction stay in f32.
    """
    x = jnp.dot(h_ref[...], w_in_ref[...], preferred_element_type=jnp.float32)
    x = x + b_in_ref[...]
    ss_ref[...] = jnp.sum(x * x, axis=-1, keepdims=True)   # per-row ||x||^2 (f32)
    x_ref[...] = x.astype(x_ref.dtype)                      # store X (bf16 by default)


def _apply_kernel(x_ref, c_ref, w0_ref, fb_ref, ln_w_ref, ln_b_ref,
                  w_out_ref, b_out_ref, logits_ref, norm_ref, *, eps):
    """tok = X@W0 + c*rowsum(X) + b_fast -> LayerNorm -> @ W_out_tile + b_out_tile.

    Grid is (row_tiles, vocab_tiles).  The row-wise part (fast-weight apply +
    LayerNorm) is computed once per row tile (j == 0) into a VMEM scratch and
    reused for every vocab tile, so each step is one (tm, D) x (D, tn) GEMM.
    """
    @pl.when(pl.program_id(1) == 0)
    def _():
        x_bf = x_ref[...]
        tok = jnp.dot(x_bf, w0_ref[...], preferred_element_type=jnp.float32)
        # W_fast(t) = W0 + c_t * ones  =>  extra term is c_t * rowsum(x_t), broadcast over D.
        rs = jnp.sum(x_bf.astype(jnp.float32), axis=-1, keepdims=True)
        tok = tok + c_ref[...] * rs + fb_ref[...]
        # LayerNorm over D (f32, biased variance, affine); rsqrt -> EUP slot.
        mean = jnp.mean(tok, axis=-1, keepdims=True)
        ctr = tok - mean
        var = jnp.mean(ctr * ctr, axis=-1, keepdims=True)
        norm = ctr * jax.lax.rsqrt(var + eps)
        norm = norm * ln_w_ref[...] + ln_b_ref[...]
        norm_ref[...] = norm.astype(norm_ref.dtype)

    logits_ref[...] = (
        jnp.dot(norm_ref[...], w_out_ref[...], preferred_element_type=jnp.float32)
        + b_out_ref[...])


def token_based_ttt(hidden_states, params, *, lr_scale=0.01, eps=1e-5,
                    block_rows=512, block_vocab=2048,
                    compute_dtype=jnp.bfloat16,
                    vmem_limit_bytes=48 * 1024 * 1024):
    """hidden_states: [B, T, Hw] float32 (wav2vec2 final hidden states).

    compute_dtype is the MXU-input / X-storage dtype (bf16 default); accumulation,
    the ||x||^2 / cumsum path and LayerNorm always stay in f32.
    On v7x keep block_rows <= 512 and vmem_limit_bytes <= ~56 MiB (64 MiB physical);
    on v6e/v5e larger tiles / a raised vmem limit are fine.
    """
    B, T, Hw = hidden_states.shape
    D = params["w_in"].shape[1]
    V = params["w_out"].shape[1]
    rows = B * T

    # Row tile: multiple of 16 (bf16 sublane packing).  No explicit jnp.pad of the
    # activations: ragged tails are handled by pl.cdiv grids + masked stores.
    tm = min(block_rows, _round_up(rows, 16))
    tn = min(block_vocab, V)
    grid_rows = pl.cdiv(rows, tm)
    grid_v = pl.cdiv(V, tn)

    # One-time wrapper-side casts to the MXU input dtype (bf16 by default): halves the
    # weight/activation DMA bytes and removes per-grid-step VPU casts inside the kernels.
    h2 = hidden_states.reshape(rows, Hw).astype(compute_dtype)
    w_in = params["w_in"].astype(compute_dtype)
    w0 = params["w_fast0"].astype(compute_dtype)
    w_out = params["w_out"].astype(compute_dtype)
    b_in = params["b_in"].astype(jnp.float32)
    b_fast = params["b_fast"].astype(jnp.float32)
    ln_w = params["ln_w"].astype(jnp.float32)
    ln_b = params["ln_b"].astype(jnp.float32)
    b_out = params["b_out"].astype(jnp.float32)

    # ---- Kernel 1: input projection + per-row ||x||^2 (fully parallel row grid) ----
    x2, ss2 = pl.pallas_call(
        _inproj_kernel,
        grid=(grid_rows,),
        in_specs=[pl.BlockSpec((tm, Hw), lambda i: (i, 0)),
                  pl.BlockSpec((Hw, D), lambda i: (0, 0)),
                  pl.BlockSpec((1, D), lambda i: (0, 0))],
        out_specs=[pl.BlockSpec((tm, D), lambda i: (i, 0)),
                   pl.BlockSpec((tm, 1), lambda i: (i, 0))],
        out_shape=[jax.ShapeDtypeStruct((rows, D), compute_dtype),
                   jax.ShapeDtypeStruct((rows, 1), jnp.float32)],
        compiler_params=pltpu.CompilerParams(
            dimension_semantics=("parallel",),
            vmem_limit_bytes=vmem_limit_bytes),
    )(h2, w_in, b_in)

    # ---- Tiny sequential piece: exclusive cumsum of per-token scalars (f32) ----
    # u_t = lr_scale * mean_b ||x_{b,t}||^2 ; c_t = sum_{s<t} u_s  (last token's u is
    # never used, matching "update only if t < T-1").
    u = lr_scale * jnp.mean(ss2.reshape(B, T), axis=0)                        # (T,)
    c = jnp.concatenate([jnp.zeros((1,), jnp.float32), jnp.cumsum(u[:-1])])   # (T,)
    c2 = jnp.broadcast_to(c[None, :], (B, T)).reshape(rows, 1)

    # ---- Kernel 2: fast-weight apply + LayerNorm (once per row tile) + vocab-tiled
    #      output projection.  Rows "parallel" (megacore), vocab "arbitrary" (scratch reuse).
    logits2 = pl.pallas_call(
        functools.partial(_apply_kernel, eps=eps),
        grid=(grid_rows, grid_v),
        in_specs=[
            pl.BlockSpec((tm, D), lambda i, j: (i, 0)),    # X row tile (bf16)
            pl.BlockSpec((tm, 1), lambda i, j: (i, 0)),    # c_t per row (f32)
            pl.BlockSpec((D, D), lambda i, j: (0, 0)),     # W0 (bf16, constant block)
            pl.BlockSpec((1, D), lambda i, j: (0, 0)),     # b_fast
            pl.BlockSpec((1, D), lambda i, j: (0, 0)),     # ln_w
            pl.BlockSpec((1, D), lambda i, j: (0, 0)),     # ln_b
            pl.BlockSpec((D, tn), lambda i, j: (0, j)),    # W_out vocab tile (bf16)
            pl.BlockSpec((1, tn), lambda i, j: (0, j)),    # b_out vocab tile
        ],
        out_specs=pl.BlockSpec((tm, tn), lambda i, j: (i, j)),
        out_shape=jax.ShapeDtypeStruct((rows, V), jnp.float32),
        scratch_shapes=[pltpu.VMEM((tm, D), compute_dtype)],   # LayerNorm'ed activations
        compiler_params=pltpu.CompilerParams(
            dimension_semantics=("parallel", "arbitrary"),
            vmem_limit_bytes=vmem_limit_bytes),
    )(x2, c2, w0, b_fast, ln_w, ln_b, w_out, b_out)

    return logits2.reshape(B, T, V)


def _reference(hidden_states, params, *, lr_scale=0.01, eps=1e-5):
    """Pure-JAX reference mirroring the PyTorch sequential forward loop (f32)."""
    x = hidden_states @ params["w_in"] + params["b_in"][0]          # (B, T, D)
    B, T, D = x.shape
    w_fast = params["w_fast0"]
    outs = []
    for t in range(T):
        xt = x[:, t, :]                                             # (B, D)
        tok = xt @ w_fast + params["b_fast"][0]
        mean = jnp.mean(tok, axis=-1, keepdims=True)
        var = jnp.mean((tok - mean) ** 2, axis=-1, keepdims=True)
        norm = (tok - mean) / jnp.sqrt(var + eps)
        norm = norm * params["ln_w"][0] + params["ln_b"][0]
        outs.append(norm)
        if t < T - 1:
            upd = lr_scale * jnp.mean(jnp.sum(xt * xt, axis=-1))
            w_fast = w_fast + upd
    out = jnp.stack(outs, axis=1)                                   # (B, T, D)
    return out @ params["w_out"] + params["b_out"][0]               # (B, T, V)


def make_params(key, wav2vec2_hidden, hidden_size, vocab_size):
    k = jax.random.split(key, 4)
    return {
        # fast weights: randn(D, D) * 0.01 ; fast bias: zeros
        "w_fast0": jax.random.normal(k[0], (hidden_size, hidden_size), jnp.float32) * 0.01,
        "b_fast": jnp.zeros((1, hidden_size), jnp.float32),
        # input projection Linear(wav2vec2_hidden, hidden)
        "w_in": jax.random.normal(k[1], (wav2vec2_hidden, hidden_size), jnp.float32) * 0.02,
        "b_in": jnp.zeros((1, hidden_size), jnp.float32),
        # output projection Linear(hidden, vocab)
        "w_out": jax.random.normal(k[2], (hidden_size, vocab_size), jnp.float32) * 0.02,
        "b_out": jnp.zeros((1, vocab_size), jnp.float32),
        # LayerNorm default init
        "ln_w": jnp.ones((1, hidden_size), jnp.float32),
        "ln_b": jnp.zeros((1, hidden_size), jnp.float32),
    }


if __name__ == "__main__":
    # TODO(synk): the wav2vec2 backbone itself is not translated; its final
    # hidden_states tensor is synthesized here as the kernel input.
    B, T = 2, 8
    WAV2VEC2_HIDDEN = 256
    HIDDEN = 128
    VOCAB = 256

    key = jax.random.PRNGKey(0)
    k_h, k_p = jax.random.split(key)
    hidden_states = jax.random.normal(k_h, (B, T, WAV2VEC2_HIDDEN), jnp.float32)
    params = make_params(k_p, WAV2VEC2_HIDDEN, HIDDEN, VOCAB)

    ref = _reference(hidden_states, params)

    # Default bf16 MXU-input path (f32 accumulation / LayerNorm, bf16 X round trip).
    ttt_bf16 = jax.jit(token_based_ttt)
    logits = jax.block_until_ready(ttt_bf16(hidden_states, params))
    assert logits.shape == (B, T, VOCAB)
    assert jnp.allclose(logits, ref, rtol=2e-2, atol=2e-2), "bf16 path mismatch vs reference"

    # Exact f32 path sanity check.
    ttt_f32 = jax.jit(functools.partial(token_based_ttt, compute_dtype=jnp.float32))
    logits_f32 = jax.block_until_ready(ttt_f32(hidden_states, params))
    assert jnp.allclose(logits_f32, ref, rtol=1e-3, atol=1e-3), "f32 path mismatch vs reference"

    print("KERNEL_OK")
</pallas_src>

<mosaic_0001>
module attributes {stable_mosaic.version = 11 : i64} {
  func.func @_inproj_kernel(%arg0: i32, %arg1: memref<16x256xbf16, #tpu.memory_space<vmem>>, %arg2: memref<256x128xbf16, #tpu.memory_space<vmem>>, %arg3: memref<1x128xf32, #tpu.memory_space<vmem>>, %arg4: memref<16x128xbf16, #tpu.memory_space<vmem>>, %arg5: memref<16x1xf32, #tpu.memory_space<vmem>>) attributes {dimension_semantics = [#tpu.dimension_semantics<parallel>], iteration_bounds = array<i64: 1>, scalar_prefetch = 0 : i64, scratch_operands = 0 : i64, tpu.core_type = #tpu.core_type<tc>, window_params = [{transform_indices = @transform_0, window_bounds = array<i64: 16, 256>}, {pipeline_mode = #tpu.pipeline_mode<synchronous>, transform_indices = @transform_1, window_bounds = array<i64: 256, 128>}, {pipeline_mode = #tpu.pipeline_mode<synchronous>, transform_indices = @transform_2, window_bounds = array<i64: 1, 128>}, {transform_indices = @transform_3, window_bounds = array<i64: 16, 128>}, {transform_indices = @transform_4, window_bounds = array<i64: 16, 1>}]} {
    %c0 = arith.constant 0 : index
    %c0_0 = arith.constant 0 : index
    %0 = vector.load %arg1[%c0, %c0_0] : memref<16x256xbf16, #tpu.memory_space<vmem>>, vector<16x256xbf16>
    %c0_1 = arith.constant 0 : index
    %c0_2 = arith.constant 0 : index
    %1 = vector.load %arg2[%c0_1, %c0_2] : memref<256x128xbf16, #tpu.memory_space<vmem>>, vector<256x128xbf16>
    %cst = arith.constant dense<0.000000e+00> : vector<16x128xf32>
    %2 = tpu.matmul %0, %1, %cst {dimension_numbers = #tpu.dot_dimension_numbers<[1], [0], [0], [1], [0, 0, 1, 1], [], []>} : vector<16x256xbf16>, vector<256x128xbf16>, vector<16x128xf32> -> vector<16x128xf32>
    %c0_3 = arith.constant 0 : index
    %c0_4 = arith.constant 0 : index
    %3 = vector.load %arg3[%c0_3, %c0_4] : memref<1x128xf32, #tpu.memory_space<vmem>>, vector<1x128xf32>
    %4 = vector.broadcast %3 : vector<1x128xf32> to vector<16x128xf32>
    %5 = arith.addf %2, %4 : vector<16x128xf32>
    %6 = arith.mulf %5, %5 : vector<16x128xf32>
    %cst_5 = arith.constant dense<0.000000e+00> : vector<16xf32>
    %7 = vector.multi_reduction <add>, %6, %cst_5 [1] : vector<16x128xf32> to vector<16xf32>
    %8 = vector.shape_cast %7 : vector<16xf32> to vector<16x1xf32>
    %c0_6 = arith.constant 0 : index
    %c0_7 = arith.constant 0 : index
    %9 = vector.load %arg5[%c0_6, %c0_7] : memref<16x1xf32, #tpu.memory_space<vmem>>, vector<16x1xf32>
    tpu.vector_store %arg5[%c0_6, %c0_7], %8 {strides = array<i32>} : memref<16x1xf32, #tpu.memory_space<vmem>>, vector<16x1xf32>,
    %10 = arith.truncf %5 : vector<16x128xf32> to vector<16x128xbf16>
    %c0_8 = arith.constant 0 : index
    %c0_9 = arith.constant 0 : index
    %11 = vector.load %arg4[%c0_8, %c0_9] : memref<16x128xbf16, #tpu.memory_space<vmem>>, vector<16x128xbf16>
    tpu.vector_store %arg4[%c0_8, %c0_9], %10 {strides = array<i32>} : memref<16x128xbf16, #tpu.memory_space<vmem>>, vector<16x128xbf16>,
    return
  }
  func.func @transform_0(%arg0: i32) -> (i32, i32) {
    %c0_i32 = arith.constant 0 : i32
    %c0_i32_0 = arith.constant 0 : i32
    return %arg0, %c0_i32 : i32, i32
  }
  func.func @transform_1(%arg0: i32) -> (i32, i32) {
    %c0_i32 = arith.constant 0 : i32
    %c0_i32_0 = arith.constant 0 : i32
    %c0_i32_1 = arith.constant 0 : i32
    return %c0_i32, %c0_i32_0 : i32, i32
  }
  func.func @transform_2(%arg0: i32) -> (i32, i32) {
    %c0_i32 = arith.constant 0 : i32
    %c0_i32_0 = arith.constant 0 : i32
    %c0_i32_1 = arith.constant 0 : i32
    return %c0_i32, %c0_i32_0 : i32, i32
  }
  func.func @transform_3(%arg0: i32) -> (i32, i32) {
    %c0_i32 = arith.constant 0 : i32
    %c0_i32_0 = arith.constant 0 : i32
    return %arg0, %c0_i32 : i32, i32
  }
  func.func @transform_4(%arg0: i32) -> (i32, i32) {
    %c0_i32 = arith.constant 0 : i32
    %c0_i32_0 = arith.constant 0 : i32
    return %arg0, %c0_i32 : i32, i32
  }
}

module attributes {stable_mosaic.version = 11 : i64} {
  func.func @_apply_kernel(%arg0: i32, %arg1: i32, %arg2: memref<16x128xbf16, #tpu.memory_space<vmem>>, %arg3: memref<16x1xf32, #tpu.memory_space<vmem>>, %arg4: memref<128x128xbf16, #tpu.memory_space<vmem>>, %arg5: memref<1x128xf32, #tpu.memory_space<vmem>>, %arg6: memref<1x128xf32, #tpu.memory_space<vmem>>, %arg7: memref<1x128xf32, #tpu.memory_space<vmem>>, %arg8: memref<128x256xbf16, #tpu.memory_space<vmem>>, %arg9: memref<1x256xf32, #tpu.memory_space<vmem>>, %arg10: memref<16x256xf32, #tpu.memory_space<vmem>>, %arg11: memref<16x128xbf16, #tpu.memory_space<vmem>>) attributes {dimension_semantics = [#tpu.dimension_semantics<parallel>, #tpu.dimension_semantics<arbitrary>], iteration_bounds = array<i64: 1, 1>, scalar_prefetch = 0 : i64, scratch_operands = 1 : i64, tpu.core_type = #tpu.core_type<tc>, window_params = [{transform_indices = @transform_0, window_bounds = array<i64: 16, 128>}, {transform_indices = @transform_1, window_bounds = array<i64: 16, 1>}, {pipeline_mode = #tpu.pipeline_mode<synchronous>, transform_indices = @transform_2, window_bounds = array<i64: 128, 128>}, {pipeline_mode = #tpu.pipeline_mode<synchronous>, transform_indices = @transform_3, window_bounds = array<i64: 1, 128>}, {pipeline_mode = #tpu.pipeline_mode<synchronous>, transform_indices = @transform_4, window_bounds = array<i64: 1, 128>}, {pipeline_mode = #tpu.pipeline_mode<synchronous>, transform_indices = @transform_5, window_bounds = array<i64: 1, 128>}, {transform_indices = @transform_6, window_bounds = array<i64: 128, 256>}, {transform_indices = @transform_7, window_bounds = array<i64: 1, 256>}, {transform_indices = @transform_8, window_bounds = array<i64: 16, 256>}]} {
    %c0_i32 = arith.constant 0 : i32
    %0 = arith.cmpi eq, %arg1, %c0_i32 : i32
    %1 = arith.extui %0 : i1 to i32
    %c0_i32_0 = arith.constant 0 : i32
    %2 = arith.cmpi ne, %1, %c0_i32_0 : i32
    scf.if %2 {
      %c0_8 = arith.constant 0 : index
      %c0_9 = arith.constant 0 : index
      %10 = vector.load %arg2[%c0_8, %c0_9] : memref<16x128xbf16, #tpu.memory_space<vmem>>, vector<16x128xbf16>
      %c0_10 = arith.constant 0 : index
      %c0_11 = arith.constant 0 : index
      %11 = vector.load %arg4[%c0_10, %c0_11] : memref<128x128xbf16, #tpu.memory_space<vmem>>, vector<128x128xbf16>
      %cst_12 = arith.constant dense<0.000000e+00> : vector<16x128xf32>
      %12 = tpu.matmul %10, %11, %cst_12 {dimension_numbers = #tpu.dot_dimension_numbers<[1], [0], [0], [1], [0, 0, 1, 1], [], []>} : vector<16x128xbf16>, vector<128x128xbf16>, vector<16x128xf32> -> vector<16x128xf32>
      %13 = arith.extf %10 : vector<16x128xbf16> to vector<16x128xf32>
      %cst_13 = arith.constant dense<0.000000e+00> : vector<16xf32>
      %14 = vector.multi_reduction <add>, %13, %cst_13 [1] : vector<16x128xf32> to vector<16xf32>
      %15 = vector.shape_cast %14 : vector<16xf32> to vector<16x1xf32>
      %c0_14 = arith.constant 0 : index
      %c0_15 = arith.constant 0 : index
      %16 = vector.load %arg3[%c0_14, %c0_15] : memref<16x1xf32, #tpu.memory_space<vmem>>, vector<16x1xf32>
      %17 = arith.mulf %16, %15 : vector<16x1xf32>
      %18 = vector.broadcast %17 : vector<16x1xf32> to vector<16x128xf32>
      %19 = arith.addf %12, %18 : vector<16x128xf32>
      %c0_16 = arith.constant 0 : index
      %c0_17 = arith.constant 0 : index
      %20 = vector.load %arg5[%c0_16, %c0_17] : memref<1x128xf32, #tpu.memory_space<vmem>>, vector<1x128xf32>
      %21 = vector.broadcast %20 : vector<1x128xf32> to vector<16x128xf32>
      %22 = arith.addf %19, %21 : vector<16x128xf32>
      %cst_18 = arith.constant dense<0.000000e+00> : vector<16xf32>
      %23 = vector.multi_reduction <add>, %22, %cst_18 [1] : vector<16x128xf32> to vector<16xf32>
      %24 = vector.shape_cast %23 : vector<16xf32> to vector<16x1xf32>
      %cst_19 = arith.constant 1.280000e+02 : f32
      %25 = vector.broadcast %cst_19 : f32 to vector<16x1xf32>
      %26 = arith.divf %24, %25 : vector<16x1xf32>
      %27 = vector.broadcast %26 : vector<16x1xf32> to vector<16x128xf32>
      %28 = arith.subf %22, %27 : vector<16x128xf32>
      %29 = arith.mulf %28, %28 : vector<16x128xf32>
      %cst_20 = arith.constant dense<0.000000e+00> : vector<16xf32>
      %30 = vector.multi_reduction <add>, %29, %cst_20 [1] : vector<16x128xf32> to vector<16xf32>
      %31 = vector.shape_cast %30 : vector<16xf32> to vector<16x1xf32>
      %cst_21 = arith.constant 1.280000e+02 : f32
      %32 = vector.broadcast %cst_21 : f32 to vector<16x1xf32>
      %33 = arith.divf %31, %32 : vector<16x1xf32>
      %cst_22 = arith.constant 9.99999974E-6 : f32
      %34 = vector.broadcast %cst_22 : f32 to vector<16x1xf32>
      %35 = arith.addf %33, %34 : vector<16x1xf32>
      %36 = math.rsqrt %35 : vector<16x1xf32>
      %37 = vector.broadcast %36 : vector<16x1xf32> to vector<16x128xf32>
      %38 = arith.mulf %28, %37 : vector<16x128xf32>
      %c0_23 = arith.constant 0 : index
      %c0_24 = arith.constant 0 : index
      %39 = vector.load %arg6[%c0_23, %c0_24] : memref<1x128xf32, #tpu.memory_space<vmem>>, vector<1x128xf32>
      %40 = vector.broadcast %39 : vector<1x128xf32> to vector<16x128xf32>
      %41 = arith.mulf %38, %40 : vector<16x128xf32>
      %c0_25 = arith.constant 0 : index
      %c0_26 = arith.constant 0 : index
      %42 = vector.load %arg7[%c0_25, %c0_26] : memref<1x128xf32, #tpu.memory_space<vmem>>, vector<1x128xf32>
      %43 = vector.broadcast %42 : vector<1x128xf32> to vector<16x128xf32>
      %44 = arith.addf %41, %43 : vector<16x128xf32>
      %45 = arith.truncf %44 : vector<16x128xf32> to vector<16x128xbf16>
      %c0_27 = arith.constant 0 : index
      %c0_28 = arith.constant 0 : index
      %46 = vector.load %arg11[%c0_27, %c0_28] : memref<16x128xbf16, #tpu.memory_space<vmem>>, vector<16x128xbf16>
      tpu.vector_store %arg11[%c0_27, %c0_28], %45 {strides = array<i32>} : memref<16x128xbf16, #tpu.memory_space<vmem>>, vector<16x128xbf16>,
    } else {
    }
    %c0 = arith.constant 0 : index
    %c0_1 = arith.constant 0 : index
    %3 = vector.load %arg11[%c0, %c0_1] : memref<16x128xbf16, #tpu.memory_space<vmem>>, vector<16x128xbf16>
    %c0_2 = arith.constant 0 : index
    %c0_3 = arith.constant 0 : index
    %4 = vector.load %arg8[%c0_2, %c0_3] : memref<128x256xbf16, #tpu.memory_space<vmem>>, vector<128x256xbf16>
    %cst = arith.constant dense<0.000000e+00> : vector<16x256xf32>
    %5 = tpu.matmul %3, %4, %cst {dimension_numbers = #tpu.dot_dimension_numbers<[1], [0], [0], [1], [0, 0, 1, 1], [], []>} : vector<16x128xbf16>, vector<128x256xbf16>, vector<16x256xf32> -> vector<16x256xf32>
    %c0_4 = arith.constant 0 : index
    %c0_5 = arith.constant 0 : index
    %6 = vector.load %arg9[%c0_4, %c0_5] : memref<1x256xf32, #tpu.memory_space<vmem>>, vector<1x256xf32>
    %7 = vector.broadcast %6 : vector<1x256xf32> to vector<16x256xf32>
    %8 = arith.addf %5, %7 : vector<16x256xf32>
    %c0_6 = arith.constant 0 : index
    %c0_7 = arith.constant 0 : index
    %9 = vector.load %arg10[%c0_6, %c0_7] : memref<16x256xf32, #tpu.memory_space<vmem>>, vector<16x256xf32>
    tpu.vector_store %arg10[%c0_6, %c0_7], %8 {strides = array<i32>} : memref<16x256xf32, #tpu.memory_space<vmem>>, vector<16x256xf32>,
    return
  }
  func.func @transform_0(%arg0: i32, %arg1: i32) -> (i32, i32) {
    %c0_i32 = arith.constant 0 : i32
    %c0_i32_0 = arith.constant 0 : i32
    return %arg0, %c0_i32 : i32, i32
  }
  func.func @transform_1(%arg0: i32, %arg1: i32) -> (i32, i32) {
    %c0_i32 = arith.constant 0 : i32
    %c0_i32_0 = arith.constant 0 : i32
    return %arg0, %c0_i32 : i32, i32
  }
  func.func @transform_2(%arg0: i32, %arg1: i32) -> (i32, i32) {
    %c0_i32 = arith.constant 0 : i32
    %c0_i32_0 = arith.constant 0 : i32
    %c0_i32_1 = arith.constant 0 : i32
    return %c0_i32, %c0_i32_0 : i32, i32
  }
  func.func @transform_3(%arg0: i32, %arg1: i32) -> (i32, i32) {
    %c0_i32 = arith.constant 0 : i32
    %c0_i32_0 = arith.constant 0 : i32
    %c0_i32_1 = arith.constant 0 : i32
    return %c0_i32, %c0_i32_0 : i32, i32
  }
  func.func @transform_4(%arg0: i32, %arg1: i32) -> (i32, i32) {
    %c0_i32 = arith.constant 0 : i32
    %c0_i32_0 = arith.constant 0 : i32
    %c0_i32_1 = arith.constant 0 : i32
    return %c0_i32, %c0_i32_0 : i32, i32
  }
  func.func @transform_5(%arg0: i32, %arg1: i32) -> (i32, i32) {
    %c0_i32 = arith.constant 0 : i32
    %c0_i32_0 = arith.constant 0 : i32
    %c0_i32_1 = arith.constant 0 : i32
    return %c0_i32, %c0_i32_0 : i32, i32
  }
  func.func @transform_6(%arg0: i32, %arg1: i32) -> (i32, i32) {
    %c0_i32 = arith.constant 0 : i32
    %c0_i32_0 = arith.constant 0 : i32
    return %c0_i32, %arg1 : i32, i32
  }
  func.func @transform_7(%arg0: i32, %arg1: i32) -> (i32, i32) {
    %c0_i32 = arith.constant 0 : i32
    %c0_i32_0 = arith.constant 0 : i32
    return %c0_i32, %arg1 : i32, i32
  }
  func.func @transform_8(%arg0: i32, %arg1: i32) -> (i32, i32) {
    %c0_i32 = arith.constant 0 : i32
    return %arg0, %arg1 : i32, i32
  }
}

</mosaic_0001>

<llo_original>
// kernel: token_based_ttt.2
$region0: #{token_based_ttt.2}
  #allocation0 [shape = 'u32[]', space=smem, size = 0x4, offset = 0x4, fixed_abs, tag = 'smem constant byte address 0x4 - core index']
  #allocation1 [shape = 'u32[72,128]{1,0:T(1,128)}', space=vmem, size = 0x9000, scoped, tag = 'internal scratch']
  %s0 = inlined_call_operand.vmem [shape: bf16[16,256], index: 0, kind: input, shape index: {}]
  %s1 = inlined_call_operand.vmem [shape: bf16[256,128], index: 1, kind: input, shape index: {}]
  %s2 = inlined_call_operand.vmem [shape: f32[1,128], index: 2, kind: input, shape index: {}]
  %s3 = inlined_call_operand.vmem [shape: bf16[16,128], index: 3, kind: output, shape index: {0}]
  %s4 = inlined_call_operand.vmem [shape: f32[16,1], index: 4, kind: output, shape index: {1}]
  %5 = xla_tuple %s3, %s4
  %s6 = sld [smem:[#allocation0]]
  $region30: #{token_based_ttt.2} parent=0
    _
  %s8 = ssub.s32 1, %s6
  %s9 = scalar_select 0, %s8, %s6
  // Predicated region
  $region2: #{token_based_ttt.2} parent=0 // pred_check
    _
  $region3: #{token_based_ttt.2} parent=0 // pred_check_branch
    %11 = sbr.rel (0) target = $region5
  $region4: #{token_based_ttt.2} parent=0 // pred_region
    _
  $region5: #{token_based_ttt.2} parent=0 // pred_fallthru
    _
  // Predicated region
  $region6: #{token_based_ttt.2} parent=0 // pred_check
    _
  $region7: #{token_based_ttt.2} parent=0 // pred_check_branch
    %13 = sbr.rel (0) target = $region9
  $region8: #{token_based_ttt.2} parent=0 // pred_region
    _
  $region9: #{token_based_ttt.2} parent=0 // pred_fallthru
    _
  // Predicated region
  $region10: #{token_based_ttt.2} parent=0 // pred_check
    _
  $region11: #{token_based_ttt.2} parent=0 // pred_check_branch
    %15 = sbr.rel (0) target = $region13
  $region12: #{token_based_ttt.2} parent=0 // pred_region
    _
  $region13: #{token_based_ttt.2} parent=0 // pred_fallthru
    _
  %v16 = vld [vmem:[%s0] sm:$0xff]
  %v17 = vld [vmem:[%s0 + $0x8] sm:$0xff]
  %v18 = vld [vmem:[%s1] sm:$0xf]
  %v19 = vld [vmem:[%s1 + $0x4] sm:$0xf]
  %v20 = vld [vmem:[%s1 + $0x8] sm:$0xf]
  %v21 = vld [vmem:[%s1 + $0xc] sm:$0xf]
  %v22 = vld [vmem:[%s1 + $0x10] sm:$0xf]
  %v23 = vld [vmem:[%s1 + $0x14] sm:$0xf]
  %v24 = vld [vmem:[%s1 + $0x18] sm:$0xf]
  %v25 = vld [vmem:[%s1 + $0x1c] sm:$0xf]
  %v26 = vld [vmem:[%s1 + $0x20] sm:$0xf]
  %v27 = vld [vmem:[%s1 + $0x24] sm:$0xf]
  %v28 = vld [vmem:[%s1 + $0x28] sm:$0xf]
  %v29 = vld [vmem:[%s1 + $0x2c] sm:$0xf]
  %v30 = vld [vmem:[%s1 + $0x30] sm:$0xf]
  %v31 = vld [vmem:[%s1 + $0x34] sm:$0xf]
  %v32 = vld [vmem:[%s1 + $0x38] sm:$0xf]
  %v33 = vld [vmem:[%s1 + $0x3c] sm:$0xf]
  %v34 = vld [vmem:[%s1 + $0x40] sm:$0xf]
  %v35 = vld [vmem:[%s1 + $0x44] sm:$0xf]
  %v36 = vld [vmem:[%s1 + $0x48] sm:$0xf]
  %v37 = vld [vmem:[%s1 + $0x4c] sm:$0xf]
  %v38 = vld [vmem:[%s1 + $0x50] sm:$0xf]
  %v39 = vld [vmem:[%s1 + $0x54] sm:$0xf]
  %v40 = vld [vmem:[%s1 + $0x58] sm:$0xf]
  %v41 = vld [vmem:[%s1 + $0x5c] sm:$0xf]
  %v42 = vld [vmem:[%s1 + $0x60] sm:$0xf]
  %v43 = vld [vmem:[%s1 + $0x64] sm:$0xf]
  %v44 = vld [vmem:[%s1 + $0x68] sm:$0xf]
  %v45 = vld [vmem:[%s1 + $0x6c] sm:$0xf]
  %v46 = vld [vmem:[%s1 + $0x70] sm:$0xf]
  %v47 = vld [vmem:[%s1 + $0x74] sm:$0xf]
  %v48 = vld [vmem:[%s1 + $0x78] sm:$0xf]
  %v49 = vld [vmem:[%s1 + $0x7c] sm:$0xf]
  %v50 = vld [vmem:[%s2] sm:$0x1]
  %v52 = vperm.slane %v50, 0
  %v56 = vunpack.c.l.b16 %v16
  %v57 = vunpack.c.h.b16 %v16
  %v58 = vunpack.c.l.b16 %v17
  %v59 = vunpack.c.h.b16 %v17
  %v60 = vpack.c.b16 %v58, %v56
  %v61 = vpack.c.b16 %v59, %v57
  %v96 = vunpack.c.l.b16 %v18
  %v97 = vunpack.c.l.b16 %v19
  %v98 = vunpack.c.l.b16 %v20
  %v99 = vunpack.c.l.b16 %v21
  %v100 = vunpack.c.l.b16 %v22
  %v101 = vunpack.c.l.b16 %v23
  %v102 = vunpack.c.l.b16 %v24
  %v103 = vunpack.c.l.b16 %v25
  %v104 = vunpack.c.l.b16 %v26
  %v105 = vunpack.c.l.b16 %v27
  %v106 = vunpack.c.l.b16 %v28
  %v107 = vunpack.c.l.b16 %v29
  %v108 = vunpack.c.l.b16 %v30
  %v109 = vunpack.c.l.b16 %v31
  %v110 = vunpack.c.l.b16 %v32
  %v111 = vunpack.c.l.b16 %v33
  %v112 = vunpack.c.l.b16 %v34
  %v113 = vunpack.c.l.b16 %v35
  %v114 = vunpack.c.l.b16 %v36
  %v115 = vunpack.c.l.b16 %v37
  %v116 = vunpack.c.l.b16 %v38
  %v117 = vunpack.c.l.b16 %v39
  %v118 = vunpack.c.l.b16 %v40
  %v119 = vunpack.c.l.b16 %v41
  %v120 = vunpack.c.l.b16 %v42
  %v121 = vunpack.c.l.b16 %v43
  %v122 = vunpack.c.l.b16 %v44
  %v123 = vunpack.c.l.b16 %v45
  %v124 = vunpack.c.l.b16 %v46
  %v125 = vunpack.c.l.b16 %v47
  %v126 = vunpack.c.l.b16 %v48
  %v127 = vunpack.c.l.b16 %v49
  %v128 = vpack.c.b16 %v97, %v96
  %v129 = vpack.c.b16 %v99, %v98
  %v130 = vpack.c.b16 %v101, %v100
  %v131 = vpack.c.b16 %v103, %v102
  %v132 = vpack.c.b16 %v105, %v104
  %v133 = vpack.c.b16 %v107, %v106
  %v134 = vpack.c.b16 %v109, %v108
  %v135 = vpack.c.b16 %v111, %v110
  %v136 = vpack.c.b16 %v113, %v112
  %v137 = vpack.c.b16 %v115, %v114
  %v138 = vpack.c.b16 %v117, %v116
  %v139 = vpack.c.b16 %v119, %v118
  %v140 = vpack.c.b16 %v121, %v120
  %v141 = vpack.c.b16 %v123, %v122
  %v142 = vpack.c.b16 %v125, %v124
  %v143 = vpack.c.b16 %v127, %v126
  %160 = vmatpush.bf16.msra.mxu0 %v135
  %161 = vmatpush.bf16.msra.mxu0 %v134
  %162 = vmatpush.bf16.msra.mxu0 %v133
  %163 = vmatpush.bf16.msra.mxu0 %v132
  %164 = vmatpush.bf16.msra.mxu0 %v131
  %165 = vmatpush.bf16.msra.mxu0 %v130
  %166 = vmatpush.bf16.msra.mxu0 %v129
  %167 = vmatpush.bf16.msra.mxu0 %v128
  %168 = vmatmul.bf16.gmra.mxu0 %v60
  %v169 = vpop.f32.mrf.mxu0
  %v170 = vadd.f32 %v52, %v169
  %v171 = vpop.f32.mrf.mxu0
  %v172 = vadd.f32 %v52, %v171
  %173 = vdwg.mxu0
  %174 = vmatpush.bf16.msra.mxu0 %v143
  %175 = vmatpush.bf16.msra.mxu0 %v142
  %176 = vmatpush.bf16.msra.mxu0 %v141
  %177 = vmatpush.bf16.msra.mxu0 %v140
  %178 = vmatpush.bf16.msra.mxu0 %v139
  %179 = vmatpush.bf16.msra.mxu0 %v138
  %180 = vmatpush.bf16.msra.mxu0 %v137
  %181 = vmatpush.bf16.msra.mxu0 %v136
  %182 = vmatmul.bf16.gmra.mxu0 %v61
  %v183 = vpop.f32.mrf.mxu0
  %v184 = vadd.f32 %v170, %v183
  %v185 = vpop.f32.mrf.mxu0
  %v186 = vadd.f32 %v172, %v185
  %187 = vdwg.mxu0
  %v188 = vmul.f32 %v184, %v184
  %v189 = vmul.f32 %v186, %v186
  %190 = vadd.xlane.f32.xlu0 %v188
  %v191 = vpop.xlane.xlu0 %190
  %192 = vadd.xlane.f32.xlu0 %v189
  %v193 = vpop.xlane.xlu0 %192
  %vm194 = vcmask 7168
  %195 = vst.msk [vmem:[%s4] sm:$0xff] %vm194, %v191
  %196 = vst.msk [vmem:[%s4 + $0x8] sm:$0xff] %vm194, %v193
  %v197 = vpack.c.bf16 %v184, %v184
  %v198 = vpack.c.bf16 %v186, %v186
  %199 = vst [vmem:[%s3] sm:$0xf] %v197
  %200 = vst [vmem:[%s3 + $0x4] sm:$0xf] %v198
  // Predicated region
  $region14: #{token_based_ttt.2} parent=0 // pred_check
    _
  $region15: #{token_based_ttt.2} parent=0 // pred_check_branch
    %202 = sbr.rel (0) target = $region17
  $region16: #{token_based_ttt.2} parent=0 // pred_region
    _
  $region17: #{token_based_ttt.2} parent=0 // pred_fallthru
    _
  // Predicated region
  $region18: #{token_based_ttt.2} parent=0 // pred_check
    _
  $region19: #{token_based_ttt.2} parent=0 // pred_check_branch
    %204 = sbr.rel (0) target = $region21
  $region20: #{token_based_ttt.2} parent=0 // pred_region
    _
  $region21: #{token_based_ttt.2} parent=0 // pred_fallthru
    _
  // Predicated region
  $region22: #{token_based_ttt.2} parent=0 // pred_check
    _
  $region23: #{token_based_ttt.2} parent=0 // pred_check_branch
    %206 = sbr.rel (0) target = $region25
  $region24: #{token_based_ttt.2} parent=0 // pred_region
    _
  $region25: #{token_based_ttt.2} parent=0 // pred_fallthru
    _
  // Predicated region
  $region26: #{token_based_ttt.2} parent=0 // pred_check
    _
  $region27: #{token_based_ttt.2} parent=0 // pred_check_branch
    %208 = sbr.rel (0) target = $region29
  $region28: #{token_based_ttt.2} parent=0 // pred_region
    _
  $region29: #{token_based_ttt.2} parent=0 // pred_fallthru
    _

// kernel: token_based_ttt.3
$region0: #{token_based_ttt.3}
  #allocation0 [shape = 'u32[]', space=smem, size = 0x4, offset = 0x4, fixed_abs, tag = 'smem constant byte address 0x4 - core index']
  #allocation1 [shape = 'u32[72,128]{1,0:T(1,128)}', space=vmem, size = 0x9000, scoped, tag = 'internal scratch']
  #allocation2 [shape = 'bf16[16,128]{1,0:T(8,128)(2,1)}', space=vmem, size = 0x1000, scoped, tag = 'scratch operand']
  %s0 = inlined_call_operand.vmem [shape: bf16[16,128], index: 0, kind: input, shape index: {}]
  %s1 = inlined_call_operand.vmem [shape: f32[16,1], index: 1, kind: input, shape index: {}]
  %s2 = inlined_call_operand.vmem [shape: bf16[128,128], index: 2, kind: input, shape index: {}]
  %s3 = inlined_call_operand.vmem [shape: f32[1,128], index: 3, kind: input, shape index: {}]
  %s4 = inlined_call_operand.vmem [shape: f32[1,128], index: 4, kind: input, shape index: {}]
  %s5 = inlined_call_operand.vmem [shape: f32[1,128], index: 5, kind: input, shape index: {}]
  %s6 = inlined_call_operand.vmem [shape: bf16[128,256], index: 6, kind: input, shape index: {}]
  %s7 = inlined_call_operand.vmem [shape: f32[1,256], index: 7, kind: input, shape index: {}]
  %s8 = inlined_call_operand.hbm [shape: f32[16,256], index: 8, kind: output, shape index: {}]
  %s9 = sld [smem:[#allocation0]]
  $region46: #{token_based_ttt.3} parent=0
    _
  %s11 = ssub.s32 1, %s9
  %s12 = scalar_select 0, %s11, %s9
  $region1: #{token_based_ttt.3} parent=0
    #allocation3 [shape = 'u8[16384]{0}', space=vmem, size = 0x4000, scoped, tag = 'output window, operand 0, single buffered']
    #allocation4 [shape = 's32[1]{0}', space=sflag, size = 0x4, scoped, tag = 'scoped memory for token_based_ttt.3']
    %13 = vsyncpa [#allocation4], 0
    // Predicated region
    $region2: #{token_based_ttt.3} parent=1 // pred_check
      _
    $region3: #{token_based_ttt.3} parent=1 // pred_check_branch
      %15 = sbr.rel (0) target = $region5
    $region4: #{token_based_ttt.3} parent=1 // pred_region
      _
    $region5: #{token_based_ttt.3} parent=1 // pred_fallthru
      _
    // Predicated region
    $region6: #{token_based_ttt.3} parent=1 // pred_check
      _
    $region7: #{token_based_ttt.3} parent=1 // pred_check_branch
      %17 = sbr.rel (0) target = $region9
    $region8: #{token_based_ttt.3} parent=1 // pred_region
      _
    $region9: #{token_based_ttt.3} parent=1 // pred_fallthru
      _
    // Predicated region
    $region10: #{token_based_ttt.3} parent=1 // pred_check
      _
    $region11: #{token_based_ttt.3} parent=1 // pred_check_branch
      %19 = sbr.rel (0) target = $region13
    $region12: #{token_based_ttt.3} parent=1 // pred_region
      _
    $region13: #{token_based_ttt.3} parent=1 // pred_fallthru
      _
    // Predicated region
    $region14: #{token_based_ttt.3} parent=1 // pred_check
      _
    $region15: #{token_based_ttt.3} parent=1 // pred_check_branch
      %21 = sbr.rel (0) target = $region17
    $region16: #{token_based_ttt.3} parent=1 // pred_region
      _
    $region17: #{token_based_ttt.3} parent=1 // pred_fallthru
      _
    // Predicated region
    $region18: #{token_based_ttt.3} parent=1 // pred_check
      _
    $region19: #{token_based_ttt.3} parent=1 // pred_check_branch
      %23 = sbr.rel (0) target = $region21
    $region20: #{token_based_ttt.3} parent=1 // pred_region
      _
    $region21: #{token_based_ttt.3} parent=1 // pred_fallthru
      _
    // Predicated region
    $region22: #{token_based_ttt.3} parent=1 // pred_check
      _
    $region23: #{token_based_ttt.3} parent=1 // pred_check_branch
      %25 = sbr.rel (0) target = $region25
    $region24: #{token_based_ttt.3} parent=1 // pred_region
      _
    $region25: #{token_based_ttt.3} parent=1 // pred_fallthru
      _
    // Predicated region
    $region26: #{token_based_ttt.3} parent=1 // pred_check
      _
    $region27: #{token_based_ttt.3} parent=1 // pred_check_branch
      %27 = sbr.rel (0) target = $region29
    $region28: #{token_based_ttt.3} parent=1 // pred_region
      _
    $region29: #{token_based_ttt.3} parent=1 // pred_fallthru
      _
    // Predicated region
    $region30: #{token_based_ttt.3} parent=1 // pred_check
      _
    $region31: #{token_based_ttt.3} parent=1 // pred_check_branch
      %29 = sbr.rel (0) target = $region33
    $region32: #{token_based_ttt.3} parent=1 // pred_region
      _
    $region33: #{token_based_ttt.3} parent=1 // pred_fallthru
      _
    %p30 = scmp.eq.s32.totalorder 0, 0
    // Predicated region
    $region34: #{token_based_ttt.3} parent=1 // pred_check
      %p31 = pneg %p30
    $region35: #{token_based_ttt.3} parent=1 // pred_check_branch
      %33 = sbr.rel (%p31) target = $region37
    $region36: #{token_based_ttt.3} parent=1 // pred_region
      %v34 = vld [vmem:[%s0] sm:$0xf]
      %v35 = vld [vmem:[%s0 + $0x4] sm:$0xf]
      %v36 = vld [vmem:[%s2] sm:$0xf]
      %v37 = vld [vmem:[%s2 + $0x4] sm:$0xf]
      %v38 = vld [vmem:[%s2 + $0x8] sm:$0xf]
      %v39 = vld [vmem:[%s2 + $0xc] sm:$0xf]
      %v40 = vld [vmem:[%s2 + $0x10] sm:$0xf]
      %v41 = vld [vmem:[%s2 + $0x14] sm:$0xf]
      %v42 = vld [vmem:[%s2 + $0x18] sm:$0xf]
      %v43 = vld [vmem:[%s2 + $0x1c] sm:$0xf]
      %v44 = vld [vmem:[%s2 + $0x20] sm:$0xf]
      %v45 = vld [vmem:[%s2 + $0x24] sm:$0xf]
      %v46 = vld [vmem:[%s2 + $0x28] sm:$0xf]
      %v47 = vld [vmem:[%s2 + $0x2c] sm:$0xf]
      %v48 = vld [vmem:[%s2 + $0x30] sm:$0xf]
      %v49 = vld [vmem:[%s2 + $0x34] sm:$0xf]
      %v50 = vld [vmem:[%s2 + $0x38] sm:$0xf]
      %v51 = vld [vmem:[%s2 + $0x3c] sm:$0xf]
      %v52 = vunpack.c.l.bf16 %v34
      %v53 = vunpack.c.l.bf16 %v35
      %54 = vadd.xlane.f32.xlu0 %v52
      %v55 = vpop.xlane.xlu0 %54
      %56 = vadd.xlane.f32.xlu0 %v53
      %v57 = vpop.xlane.xlu0 %56
      %v58 = vld [vmem:[%s1] sm:$0xff]
      %v59 = vld [vmem:[%s1 + $0x8] sm:$0xff]
      %v60 = vmul.f32 %v58, %v55
      %v61 = vmul.f32 %v59, %v57
      %63 = vset.pattern.permute.xlu0 0
      %64 = vperm.xlu0 %63, %v60
      %v65 = vpop.permute.xlu0 %64
      %68 = vset.pattern.permute.xlu0 0
      %69 = vperm.xlu0 %68, %v61
      %v70 = vpop.permute.xlu0 %69
      %v74 = vunpack.c.l.b16 %v34
      %v75 = vunpack.c.l.b16 %v35
      %v76 = vpack.c.b16 %v75, %v74
      %v94 = vunpack.c.l.b16 %v36
      %v95 = vunpack.c.l.b16 %v37
      %v96 = vunpack.c.l.b16 %v38
      %v97 = vunpack.c.l.b16 %v39
      %v98 = vunpack.c.l.b16 %v40
      %v99 = vunpack.c.l.b16 %v41
      %v100 = vunpack.c.l.b16 %v42
      %v101 = vunpack.c.l.b16 %v43
      %v102 = vunpack.c.l.b16 %v44
      %v103 = vunpack.c.l.b16 %v45
      %v104 = vunpack.c.l.b16 %v46
      %v105 = vunpack.c.l.b16 %v47
      %v106 = vunpack.c.l.b16 %v48
      %v107 = vunpack.c.l.b16 %v49
      %v108 = vunpack.c.l.b16 %v50
      %v109 = vunpack.c.l.b16 %v51
      %v110 = vpack.c.b16 %v95, %v94
      %v111 = vpack.c.b16 %v97, %v96
      %v112 = vpack.c.b16 %v99, %v98
      %v113 = vpack.c.b16 %v101, %v100
      %v114 = vpack.c.b16 %v103, %v102
      %v115 = vpack.c.b16 %v105, %v104
      %v116 = vpack.c.b16 %v107, %v106
      %v117 = vpack.c.b16 %v109, %v108
      %126 = vmatpush.bf16.msra.mxu0 %v117
      %127 = vmatpush.bf16.msra.mxu0 %v116
      %128 = vmatpush.bf16.msra.mxu0 %v115
      %129 = vmatpush.bf16.msra.mxu0 %v114
      %130 = vmatpush.bf16.msra.mxu0 %v113
      %131 = vmatpush.bf16.msra.mxu0 %v112
      %132 = vmatpush.bf16.msra.mxu0 %v111
      %133 = vmatpush.bf16.msra.mxu0 %v110
      %134 = vmatmul.bf16.gmra.mxu0 %v76
      %v135 = vpop.f32.mrf.mxu0
      %v136 = vadd.f32 %v65, %v135
      %v137 = vpop.f32.mrf.mxu0
      %v138 = vadd.f32 %v70, %v137
      %139 = vdwg.mxu0
      %v140 = vld [vmem:[%s3] sm:$0x1]
      %v142 = vperm.slane %v140, 0
      %v144 = vadd.f32 %v136, %v142
      %v145 = vadd.f32 %v138, %v142
      %146 = vadd.xlane.f32.xlu0 %v144
      %v147 = vpop.xlane.xlu0 %146
      %148 = vadd.xlane.f32.xlu0 %v145
      %v149 = vpop.xlane.xlu0 %148
      %v150 = vrcp.pop 128.0
      %v151 = vmul.f32 128.0, %v150
      %v152 = vsub.f32 1.0, %v151
      %v153 = vmul.f32 %v150, %v152
      %v154 = vadd.f32 %v150, %v153
      %vm155 = vweird.f32 %v150
      %v156 = vsel %vm155, %v150, %v154
      %v157 = vmul.f32 %v147, %v156
      %v158 = vmul.f32 %v149, %v156
      %v159 = vsub.f32 %v144, %v157
      %v160 = vsub.f32 %v145, %v158
      %v161 = vmul.f32 %v159, %v159
      %v162 = vmul.f32 %v160, %v160
      %163 = vadd.xlane.f32.xlu0 %v161
      %v164 = vpop.xlane.xlu0 %163
      %165 = vadd.xlane.f32.xlu0 %v162
      %v166 = vpop.xlane.xlu0 %165
      %v167 = vmul.f32 %v164, %v156
      %v168 = vmul.f32 %v166, %v156
      %v169 = vadd.f32 %v167, 1e-05
      %v170 = vadd.f32 %v168, 1e-05
      %v171 = vrsqrt.pop %v169
      %v172 = vmul.f32 %v171, %v169
      %v173 = vmul.f32 %v172, %v171
      %v174 = vmul.f32 0.5, %v173
      %v175 = vsub.f32 1.5, %v174
      %v176 = vmul.f32 %v171, %v175
      %vm177 = vweird.f32 %v169
      %vm178 = vweird.f32 %v171
      %vm179 = vmor %vm177, %vm178
      %v180 = vsel %vm179, %v171, %v176
      %v181 = vrsqrt.pop %v170
      %v182 = vmul.f32 %v181, %v170
      %v183 = vmul.f32 %v182, %v181
      %v184 = vmul.f32 0.5, %v183
      %v185 = vsub.f32 1.5, %v184
      %v186 = vmul.f32 %v181, %v185
      %vm187 = vweird.f32 %v170
      %vm188 = vweird.f32 %v181
      %vm189 = vmor %vm187, %vm188
      %v190 = vsel %vm189, %v181, %v186
      %v191 = vmul.f32 %v159, %v180
      %v192 = vmul.f32 %v160, %v190
      %v193 = vld [vmem:[%s4] sm:$0x1]
      %v195 = vperm.slane %v193, 0
      %v197 = vmul.f32 %v191, %v195
      %v198 = vmul.f32 %v192, %v195
      %v199 = vld [vmem:[%s5] sm:$0x1]
      %v201 = vperm.slane %v199, 0
      %v203 = vadd.f32 %v197, %v201
      %v204 = vadd.f32 %v198, %v201
      %v205 = vpack.c.bf16 %v203, %v203
      %v206 = vpack.c.bf16 %v204, %v204
      %207 = vst [vmem:[#allocation2] sm:$0xf] %v205
      %208 = vst [vmem:[#allocation2 + $0x4] sm:$0xf] %v206
    $region37: #{token_based_ttt.3} parent=1 // pred_fallthru
      _
    %v209 = vld [vmem:[#allocation2] sm:$0xf]
    %v210 = vld [vmem:[#allocation2 + $0x4] sm:$0xf]
    %v211 = vld [vmem:[%s6] sm:$0xff]
    %v212 = vld [vmem:[%s6 + $0x8] sm:$0xff]
    %v213 = vld [vmem:[%s6 + $0x10] sm:$0xff]
    %v214 = vld [vmem:[%s6 + $0x18] sm:$0xff]
    %v215 = vld [vmem:[%s6 + $0x20] sm:$0xff]
    %v216 = vld [vmem:[%s6 + $0x28] sm:$0xff]
    %v217 = vld [vmem:[%s6 + $0x30] sm:$0xff]
    %v218 = vld [vmem:[%s6 + $0x38] sm:$0xff]
    %v219 = vld [vmem:[%s6 + $0x40] sm:$0xff]
    %v220 = vld [vmem:[%s6 + $0x48] sm:$0xff]
    %v221 = vld [vmem:[%s6 + $0x50] sm:$0xff]
    %v222 = vld [vmem:[%s6 + $0x58] sm:$0xff]
    %v223 = vld [vmem:[%s6 + $0x60] sm:$0xff]
    %v224 = vld [vmem:[%s6 + $0x68] sm:$0xff]
    %v225 = vld [vmem:[%s6 + $0x70] sm:$0xff]
    %v226 = vld [vmem:[%s6 + $0x78] sm:$0xff]
    %v227 = vld [vmem:[%s7] sm:$0x3]
    %v229 = vperm.slane %v227, 0
    %v230 = vperm.slane %v227, 1
    %v235 = vunpack.c.l.b16 %v209
    %v236 = vunpack.c.l.b16 %v210
    %v237 = vpack.c.b16 %v236, %v235
    %v255 = vunpack.c.l.b16 %v211
    %v256 = vunpack.c.h.b16 %v211
    %v257 = vunpack.c.l.b16 %v212
    %v258 = vunpack.c.h.b16 %v212
    %v259 = vunpack.c.l.b16 %v213
    %v260 = vunpack.c.h.b16 %v213
    %v261 = vunpack.c.l.b16 %v214
    %v262 = vunpack.c.h.b16 %v214
    %v263 = vunpack.c.l.b16 %v215
    %v264 = vunpack.c.h.b16 %v215
    %v265 = vunpack.c.l.b16 %v216
    %v266 = vunpack.c.h.b16 %v216
    %v267 = vunpack.c.l.b16 %v217
    %v268 = vunpack.c.h.b16 %v217
    %v269 = vunpack.c.l.b16 %v218
    %v270 = vunpack.c.h.b16 %v218
    %v271 = vunpack.c.l.b16 %v219
    %v272 = vunpack.c.h.b16 %v219
    %v273 = vunpack.c.l.b16 %v220
    %v274 = vunpack.c.h.b16 %v220
    %v275 = vunpack.c.l.b16 %v221
    %v276 = vunpack.c.h.b16 %v221
    %v277 = vunpack.c.l.b16 %v222
    %v278 = vunpack.c.h.b16 %v222
    %v279 = vunpack.c.l.b16 %v223
    %v280 = vunpack.c.h.b16 %v223
    %v281 = vunpack.c.l.b16 %v224
    %v282 = vunpack.c.h.b16 %v224
    %v283 = vunpack.c.l.b16 %v225
    %v284 = vunpack.c.h.b16 %v225
    %v285 = vunpack.c.l.b16 %v226
    %v286 = vunpack.c.h.b16 %v226
    %v287 = vpack.c.b16 %v257, %v255
    %v288 = vpack.c.b16 %v258, %v256
    %v289 = vpack.c.b16 %v261, %v259
    %v290 = vpack.c.b16 %v262, %v260
    %v291 = vpack.c.b16 %v265, %v263
    %v292 = vpack.c.b16 %v266, %v264
    %v293 = vpack.c.b16 %v269, %v267
    %v294 = vpack.c.b16 %v270, %v268
    %v295 = vpack.c.b16 %v273, %v271
    %v296 = vpack.c.b16 %v274, %v272
    %v297 = vpack.c.b16 %v277, %v275
    %v298 = vpack.c.b16 %v278, %v276
    %v299 = vpack.c.b16 %v281, %v279
    %v300 = vpack.c.b16 %v282, %v280
    %v301 = vpack.c.b16 %v285, %v283
    %v302 = vpack.c.b16 %v286, %v284
    %319 = vmatpush.bf16.msra.mxu0 %v301
    %320 = vmatpush.bf16.msra.mxu0 %v299
    %321 = vmatpush.bf16.msra.mxu0 %v297
    %322 = vmatpush.bf16.msra.mxu0 %v295
    %323 = vmatpush.bf16.msra.mxu0 %v293
    %324 = vmatpush.bf16.msra.mxu0 %v291
    %325 = vmatpush.bf16.msra.mxu0 %v289
    %326 = vmatpush.bf16.msra.mxu0 %v287
    %327 = vmatmul.bf16.gmra.mxu0 %v237
    %v328 = vpop.f32.mrf.mxu0
    %v329 = vadd.f32 %v229, %v328
    %v330 = vpop.f32.mrf.mxu0
    %v331 = vadd.f32 %v229, %v330
    %332 = vdwg.mxu0
    %333 = vmatpush.bf16.msra.mxu0 %v302
    %334 = vmatpush.bf16.msra.mxu0 %v300
    %335 = vmatpush.bf16.msra.mxu0 %v298
    %336 = vmatpush.bf16.msra.mxu0 %v296
    %337 = vmatpush.bf16.msra.mxu0 %v294
    %338 = vmatpush.bf16.msra.mxu0 %v292
    %339 = vmatpush.bf16.msra.mxu0 %v290
    %340 = vmatpush.bf16.msra.mxu0 %v288
    %341 = vmatmul.bf16.gmra.mxu0 %v237
    %v342 = vpop.f32.mrf.mxu0
    %v343 = vadd.f32 %v230, %v342
    %v344 = vpop.f32.mrf.mxu0
    %v345 = vadd.f32 %v230, %v344
    %346 = vdwg.mxu0
    %347 = vst [vmem:[#allocation3] sm:$0xff] %v329
    %348 = vst [vmem:[#allocation3 + $0x8] sm:$0xff] %v343
    %349 = vst [vmem:[#allocation3 + $0x10] sm:$0xff] %v331
    %350 = vst [vmem:[#allocation3 + $0x18] sm:$0xff] %v345
    // Predicated region
    $region38: #{token_based_ttt.3} parent=1 // pred_check
      _
    $region39: #{token_based_ttt.3} parent=1 // pred_check_branch
      %352 = sbr.rel (0) target = $region41
    $region40: #{token_based_ttt.3} parent=1 // pred_region
      %354 = vsyncadd [#allocation4], 0
      %s355 = sshll.u32 [#allocation3], 4
      %s356 = int_to_ptr.vmem [resolvable:$true] %s355
      %s357 = sshll.u32 %s8, 4
      %s358 = int_to_ptr.hbm [resolvable:$true] %s357
      %363 = dma.vmem_to_hbm [thread:$0]  %s356, 512, %s358, [#allocation4], 256, 256, 16
    $region41: #{token_based_ttt.3} parent=1 // pred_fallthru
      _
    // Predicated region
    $region42: #{token_based_ttt.3} parent=1 // pred_check
      _
    $region43: #{token_based_ttt.3} parent=1 // pred_check_branch
      %365 = sbr.rel (0) target = $region45
    $region44: #{token_based_ttt.3} parent=1 // pred_region
      %367 = dma.done [#allocation4], 512
    $region45: #{token_based_ttt.3} parent=1 // pred_fallthru
      _
    %368 = vsyncpa [#allocation4], 1

</llo_original>
